<compile_context>
chip_gen: v6e
topology: v6e:2x2x1
jax: 0.10.0
libtpu: 0.0.40
codegen_flags: <defaults>
</compile_context>

<pallas_src>
import functools

import jax
import jax.numpy as jnp
from jax.experimental import pallas as pl
from jax.experimental.pallas import tpu as pltpu

_LANES = 128                      # vreg lane width
_MIN_PALLAS_ELEMS = 128 * 1024    # ~512 KiB f32: below this, let XLA fuse into the conv
_VMEM_LIMIT_BYTES = 32 << 20      # covers 4 MiB blocks x (in+out) x double-buffer on all gens


# ----------------------------- func bodies ----------------------------------

def _apply_func(x, func_name):
    """Elementwise func bodies; used both inside the kernel and as jnp fallback."""
    if func_name == "square":
        return x * x
    if func_name == "safe_log":
        # torch.log(torch.clamp(x, min=1e-6))
        return jnp.log(jnp.maximum(x, jnp.asarray(1e-6, x.dtype)))
    if func_name == "square_safe_log":
        # Fused square -> safe_log (single HBM pass).
        # TODO(synk): only substitute this for Expression(square) -> Expression(safe_log)
        # if the model truly applies them back-to-back (braindecode-style nets often
        # put an AvgPool between them, and log(pool(x)) != pool(log(x))).
        return jnp.log(jnp.maximum(x * x, jnp.asarray(1e-6, x.dtype)))
    if func_name == "identity":
        return x
    raise ValueError(f"unknown func {func_name!r}")


# ----------------------------- kernel ---------------------------------------

def _expression_kernel(x_ref, o_ref, *, func_name):
    o_ref[...] = _apply_func(x_ref[...], func_name).astype(o_ref.dtype)


# ----------------------------- tiling policy ---------------------------------

def _round_up(n, m):
    return -(-n // m) * m


@functools.lru_cache(maxsize=1)
def _tpu_caps():
    """Return (tensorcores_per_chip, target_block_bytes) with safe fallbacks."""
    cores, block_bytes = 1, 2 << 20          # conservative default (safe on v5e)
    try:
        kind = jax.devices()[0].device_kind.lower()
    except Exception:
        return cores, block_bytes
    if "7x" in kind or "v7" in kind:         # dual-TensorCore chip, 3.2 TB/s HBM
        cores, block_bytes = 2, 4 << 20
    elif "v6" in kind or "trillium" in kind:  # single TC, 32 MiB scoped VMEM default
        cores, block_bytes = 1, 4 << 20
    return cores, block_bytes


# ----------------------------- wrapper ---------------------------------------

def _expression_pallas_2d(slab, func_name, donate_input):
    """Run the elementwise kernel over a lane-dense (rows, 128) slab."""
    rows, lanes = slab.shape
    itemsize = jnp.dtype(slab.dtype).itemsize
    cores, target_block_bytes = _tpu_caps()

    # dtype-aware sublane tile: 8 rows for f32, 16 for bf16, 32 for int8/fp8
    sub = max(8, 32 // itemsize)

    # Largest block within the per-generation bandwidth target.
    target_rows = max(sub, (target_block_bytes // (lanes * itemsize)) // sub * sub)

    # Step-count policy: >=3 steps so the prefetch/compute/writeback pipeline fills;
    # on dual-TC chips an even count >=4 so both cores get (near-)balanced work.
    steps = max(3, pl.cdiv(rows, target_rows))
    if cores == 2:
        steps = max(4, steps + (steps % 2))
    row_block = max(sub, _round_up(pl.cdiv(rows, steps), sub))
    grid = (pl.cdiv(rows, row_block),)       # last block may be partial; Pallas masks it

    n = rows * lanes
    flops = 2 * n if func_name == "square_safe_log" else n
    trans = n if "log" in func_name else 0
    cost = pl.CostEstimate(
        flops=flops, transcendentals=trans, bytes_accessed=2 * n * itemsize)

    kernel = functools.partial(_expression_kernel, func_name=func_name)

    return pl.pallas_call(
        kernel,
        out_shape=jax.ShapeDtypeStruct((rows, lanes), slab.dtype),
        grid_spec=pltpu.PrefetchScalarGridSpec(
            num_scalar_prefetch=0,
            grid=grid,
            in_specs=[pl.BlockSpec((row_block, lanes), lambda i: (i, 0))],
            out_specs=pl.BlockSpec((row_block, lanes), lambda i: (i, 0)),
        ),
        compiler_params=pltpu.CompilerParams(
            dimension_semantics=("parallel",),
            vmem_limit_bytes=_VMEM_LIMIT_BYTES),
        cost_estimate=cost,
        input_output_aliases={0: 0} if donate_input else {},
    )(slab)


def apply_expression(x, func_name, *, donate_input=False,
                     min_pallas_elems=_MIN_PALLAS_ELEMS):
    n_elems = x.size
    # Small or non-lane-aligned activations: plain jnp.  XLA fuses these into the
    # adjacent conv; a standalone pallas_call would only add HBM traffic + launch cost.
    if n_elems < min_pallas_elems or n_elems % _LANES != 0:
        return _apply_func(x, func_name)
    rows = n_elems // _LANES
    slab = x.reshape(rows, _LANES)           # contiguous reshape: no copy, no pad
    out = _expression_pallas_2d(slab, func_name, donate_input)
    return out.reshape(x.shape)              # free bitcast back to NCHW


class Expression:
    """JAX/Pallas equivalent of the PyTorch Expression(nn.Module)."""

    def __init__(self, func_name: str, donate_input: bool = False):
        self.func_name = func_name
        self.donate_input = donate_input

    def __call__(self, x: jax.Array) -> jax.Array:
        return apply_expression(x, self.func_name, donate_input=self.donate_input)


# ----------------------------- demo / test -----------------------------------

if __name__ == "__main__":
    key = jax.random.PRNGKey(0)
    k1, k2, k3 = jax.random.split(key, 3)

    # 1) Small NCHW conv-style activation -> jnp fallback path (fuses into conv).
    x = jax.random.normal(k1, (2, 4, 16, 16), dtype=jnp.float32)
    y_small = Expression("safe_log")(Expression("square")(x))
    y_small = jax.block_until_ready(y_small)
    ref_small = jnp.log(jnp.maximum(x * x, 1e-6))
    assert y_small.shape == x.shape and y_small.dtype == x.dtype
    assert jnp.allclose(y_small, ref_small, atol=1e-6, rtol=1e-6)

    # 2) Larger activation (2*8*128*128 = 256K elems ~ 1 MiB) -> Pallas path.
    x_big = jax.random.normal(k2, (2, 8, 128, 128), dtype=jnp.float32)
    y_sq = jax.block_until_ready(Expression("square")(x_big))
    y_big = jax.block_until_ready(Expression("safe_log")(y_sq))
    ref_big = jnp.log(jnp.maximum(x_big * x_big, 1e-6))
    assert y_big.shape == x_big.shape and y_big.dtype == x_big.dtype
    assert jnp.allclose(y_sq, x_big * x_big, atol=1e-6, rtol=1e-6)
    assert jnp.allclose(y_big, ref_big, atol=1e-6, rtol=1e-6)

    # Fused variant (opt-in, single HBM pass) — verified as a standalone func.
    y_fused = jax.block_until_ready(Expression("square_safe_log")(x_big))
    assert jnp.allclose(y_fused, ref_big, atol=1e-6, rtol=1e-6)

    # 3) Odd-shaped input exercises the jnp fallback path (no pad/slice copies).
    x_odd = jax.random.normal(k3, (2, 3, 7, 5), dtype=jnp.float32)
    y_odd = jax.block_until_ready(Expression("safe_log")(Expression("square")(x_odd)))
    assert jnp.allclose(y_odd, jnp.log(jnp.maximum(x_odd * x_odd, 1e-6)),
                        atol=1e-6, rtol=1e-6)

    print("KERNEL_OK")
</pallas_src>

<mosaic_0001>
module attributes {stable_mosaic.version = 11 : i64} {
  func.func @_expression_kernel(%arg0: i32, %arg1: memref<688x128xf32, #tpu.memory_space<vmem>>, %arg2: memref<688x128xf32, #tpu.memory_space<vmem>>) attributes {dimension_semantics = [#tpu.dimension_semantics<parallel>], iteration_bounds = array<i64: 3>, scalar_prefetch = 0 : i64, scratch_operands = 0 : i64, tpu.core_type = #tpu.core_type<tc>, window_params = [{transform_indices = @transform_0, window_bounds = array<i64: 688, 128>}, {transform_indices = @transform_1, window_bounds = array<i64: 688, 128>}]} {
    %c0 = arith.constant 0 : index
    %c0_0 = arith.constant 0 : index
    %0 = vector.load %arg1[%c0, %c0_0] : memref<688x128xf32, #tpu.memory_space<vmem>>, vector<688x128xf32>
    %1 = arith.mulf %0, %0 : vector<688x128xf32>
    %c0_1 = arith.constant 0 : index
    %c0_2 = arith.constant 0 : index
    %2 = vector.load %arg2[%c0_1, %c0_2] : memref<688x128xf32, #tpu.memory_space<vmem>>, vector<688x128xf32>
    tpu.vector_store %arg2[%c0_1, %c0_2], %1 {strides = array<i32>} : memref<688x128xf32, #tpu.memory_space<vmem>>, vector<688x128xf32>,
    return
  }
  func.func @transform_0(%arg0: i32) -> (i32, i32) {
    %c0_i32 = arith.constant 0 : i32
    %c0_i32_0 = arith.constant 0 : i32
    return %arg0, %c0_i32 : i32, i32
  }
  func.func @transform_1(%arg0: i32) -> (i32, i32) {
    %c0_i32 = arith.constant 0 : i32
    %c0_i32_0 = arith.constant 0 : i32
    return %arg0, %c0_i32 : i32, i32
  }
}

</mosaic_0001>

<llo_original>
// kernel: tpu_custom_call.1
$region0: #{tpu_custom_call.1}
  #allocation0 [shape = 'u32[]', space=smem, size = 0x4, offset = 0x4, fixed_abs, tag = 'smem constant byte address 0x4 - core index']
  #allocation1 [shape = 'u32[144,128]{1,0:T(1,128)}', space=vmem, size = 0x12000, scoped, tag = 'internal scratch']
  %s0 = inlined_call_operand.hbm [shape: f32[2048,128], index: 0, kind: input, shape index: {}]
  %s1 = inlined_call_operand.hbm [shape: f32[2048,128], index: 1, kind: output, shape index: {}]
  %s2 = sld [smem:[#allocation0]]
  $region41: #{tpu_custom_call.1} parent=0
    _
  %s4 = ssub.s32 1, %s2
  %s5 = scalar_select 0, %s4, %s2
  $region1: #{tpu_custom_call.1} parent=0
    #allocation2 [shape = 'u8[704512]{0}', space=vmem, size = 0xac000, scoped, tag = 'input window, operand 0']
    #allocation3 [shape = 's32[2]{0}', space=sflag, size = 0x8, scoped, tag = 'scoped memory for tpu_custom_call.1']
    #allocation4 [shape = 's32[2]{0}', space=sflag, size = 0x8, scoped, tag = 'scoped memory for tpu_custom_call.1']
    #allocation5 [shape = 'u8[704512]{0}', space=vmem, size = 0xac000, scoped, tag = 'output window, operand 0']
    %6 = vsyncpa [#allocation3], 0
    %s7 = scalar_lea.sflag [#allocation3], 1
    %8 = vsyncpa %s7, 0
    %9 = vsyncpa [#allocation4], 0
    %s10 = scalar_lea.sflag [#allocation4], 1
    %11 = vsyncpa %s10, 0
    loop: start=0, step=1, limit=5
    $region2: #{tpu_custom_call.1} parent=1 // loop_pre_header
      _
    $region3: #{tpu_custom_call.1} parent=1 // loop_header
      %s13 = sphi 0, %s17
      %p14 = scmp.ge.s32.totalorder %s13, 5
      %s23 = sphi 0, %s25
      %s26 = sphi 0, %s23
      %s27 = sphi 0, %s26
      %s43 = sphi 0, %s27
      %s49 = sphi 0, %s51
      %s52 = sphi 0, %s49
      %s53 = sphi 0, %s52
      %s69 = sphi 0, %s53
    $region4: #{tpu_custom_call.1} parent=1 // loop_header_branch
      %16 = sbr.rel (%p14) target = $region8
    $region5: #{tpu_custom_call.1} parent=1 // loop_body
      %s18 = ssub.s32 %s13, 1
      %s19 = ssub.s32 %s13, 2
      %s20 = sadd.s32 %s13, 1
      %s21 = ssub.s32 %s13, %s20
      %p22 = scmp.eq.s32.totalorder %s21, 0
      %s24 = sadd.s32 %s23, 1
      %s25 = scalar_select %p22, %s23, %s24
      %p28 = pneg %p22
      %p29 = scmp.eq.s32.totalorder %s13, 2
      %p30 = por %p28, %p29
      %p31 = scmp.ne.s32.totalorder %s23, %s26
      %p32 = scmp.eq.s32.totalorder %s13, 0
      %p33 = por %p31, %p32
      %p34 = scmp.ne.s32.totalorder %s23, %s26
      %p35 = scmp.eq.s32.totalorder %s18, 2
      %p36 = por %p34, %p35
      %p37 = scmp.ne.s32.totalorder %s26, %s27
      %p38 = scmp.eq.s32.totalorder %s18, 0
      %p39 = por %p37, %p38
      %p40 = scmp.ne.s32.totalorder %s26, %s27
      %p41 = scmp.eq.s32.totalorder %s19, 2
      %p42 = por %p40, %p41
      %p44 = scmp.ne.s32.totalorder %s27, %s43
      %p45 = scmp.eq.s32.totalorder %s19, 0
      %p46 = por %p44, %p45
      %s47 = ssub.s32 %s13, %s20
      %p48 = scmp.eq.s32.totalorder %s47, 0
      %s50 = sadd.s32 %s49, 1
      %s51 = scalar_select %p48, %s49, %s50
      %p54 = pneg %p48
      %p55 = scmp.eq.s32.totalorder %s13, 2
      %p56 = por %p54, %p55
      %p57 = scmp.ne.s32.totalorder %s49, %s52
      %p58 = scmp.eq.s32.totalorder %s13, 0
      %p59 = por %p57, %p58
      %p60 = scmp.ne.s32.totalorder %s49, %s52
      %p61 = scmp.eq.s32.totalorder %s18, 2
      %p62 = por %p60, %p61
      %p63 = scmp.ne.s32.totalorder %s52, %s53
      %p64 = scmp.eq.s32.totalorder %s18, 0
      %p65 = por %p63, %p64
      %p66 = scmp.ne.s32.totalorder %s52, %s53
      %p67 = scmp.eq.s32.totalorder %s19, 2
      %p68 = por %p66, %p67
      %p70 = scmp.ne.s32.totalorder %s53, %s69
      %p71 = scmp.eq.s32.totalorder %s19, 0
      %p72 = por %p70, %p71
      %p73 = scmp.le.s32.totalorder 1, %s13
      %p74 = scmp.lt.s32.totalorder %s13, 4
      %p75 = pnand %p73, %p74
      %p76 = pneg %p75
      // Predicated region
      $region9: #{tpu_custom_call.1} parent=5 // pred_check
        _
      $region10: #{tpu_custom_call.1} parent=5 // pred_check_branch
        %78 = sbr.rel (%p75) target = $region12
      $region11: #{tpu_custom_call.1} parent=5 // pred_region
        %s79 = ssub.s32 %s13, 1
      $region12: #{tpu_custom_call.1} parent=5 // pred_fallthru
        _
      %p80 = scmp.lt.s32.totalorder %s13, 3
      // Predicated region
      $region13: #{tpu_custom_call.1} parent=5 // pred_check
        %p81 = pneg %p80
      $region14: #{tpu_custom_call.1} parent=5 // pred_check_branch
        %83 = sbr.rel (%p81) target = $region16
      $region15: #{tpu_custom_call.1} parent=5 // pred_region
        // Predicated region
        $region17: #{tpu_custom_call.1} parent=15 // pred_check
          %p84 = pneg %p33
        $region18: #{tpu_custom_call.1} parent=15 // pred_check_branch
          %86 = sbr.rel (%p84) target = $region20
        $region19: #{tpu_custom_call.1} parent=15 // pred_region
          %s87 = sand.u32 %s23, 1
          %s88 = scalar_lea.sflag [#allocation3], %s87
          %s89 = sand.u32 %s23, 1
          %s90 = smul.addr %s89, 688
          %s91 = scalar_lea.vmem [#allocation2], %s90
          %s92 = smul.u32 86, %s13
          %s93 = ssub.s32 256, %s92
          %p94 = scmp.lt.s32.totalorder %s93, 86
          %s95 = scalar_select %p94, %s93, 86
          %s96 = smul.u32 128, %s95
          %s98 = ssub.s32 11008, %s96
          %99 = vsyncadd %s88, %s98
          %p100 = scmp.ne.s32.totalorder 0, %s96
          %s101 = smul.addr %s92, 128
          %s102 = scalar_lea.hbm %s0, %s101
          %s103 = smul.u32 8, %s95
          %s104 = sshll.u32 %s91, 4
          %s105 = int_to_ptr.vmem [resolvable:$true] %s104
          %s106 = sshll.u32 %s103, 4
          %110 = dma.hbm_to_vmem [thread:$0]  (%p100), %s102, %s106, %s105, %s88, 128, 128, 8
        $region20: #{tpu_custom_call.1} parent=15 // pred_fallthru
          _
      $region16: #{tpu_custom_call.1} parent=5 // pred_fallthru
        _
      %p111 = scmp.le.s32.totalorder 1, %s13
      %p112 = scmp.lt.s32.totalorder %s13, 4
      %p113 = pnand %p111, %p112
      %p114 = pneg %p113
      // Predicated region
      $region21: #{tpu_custom_call.1} parent=5 // pred_check
        _
      $region22: #{tpu_custom_call.1} parent=5 // pred_check_branch
        %116 = sbr.rel (%p113) target = $region24
      $region23: #{tpu_custom_call.1} parent=5 // pred_region
        %s117 = ssub.s32 %s13, 1
        %s118 = sand.u32 %s26, 1
        %s119 = scalar_lea.sflag [#allocation3], %s118
        %s120 = sand.u32 %s26, 1
        %s121 = smul.addr %s120, 688
        %s122 = scalar_lea.vmem [#allocation2], %s121
        // Predicated region
        $region25: #{tpu_custom_call.1} parent=23 // pred_check
          %p123 = pneg %p39
        $region26: #{tpu_custom_call.1} parent=23 // pred_check_branch
          %125 = sbr.rel (%p123) target = $region28
        $region27: #{tpu_custom_call.1} parent=23 // pred_region
          %126 = dma.done %s119, 11008
        $region28: #{tpu_custom_call.1} parent=23 // pred_fallthru
          _
        %s127 = sand.u32 %s26, 1
        %s128 = scalar_lea.sflag [#allocation3], %s127
        %s129 = sand.u32 %s26, 1
        %s130 = smul.addr %s129, 688
        %s131 = scalar_lea.vmem [#allocation2], %s130
        %p132 = pneg %p39
        %p133 = pneg %p36
        %p134 = pneg %p65
        %p135 = pneg %p62
        %s136 = sand.u32 %s52, 1
        %s137 = scalar_lea.sflag [#allocation4], %s136
        %s138 = sand.u32 %s52, 1
        %s139 = smul.addr %s138, 688
        %s140 = scalar_lea.vmem [#allocation5], %s139
        %s141 = smul.u32 86, %s18
        %s142 = ssub.s32 256, %s141
        %p143 = scmp.lt.s32.totalorder %s142, 86
        %s144 = scalar_select %p143, %s142, 86
        %s145 = smul.u32 128, %s144
        %s146 = smul.u32 86, %s18
        %s147 = ssub.s32 256, %s146
        %p148 = scmp.lt.s32.totalorder %s147, 86
        %s149 = scalar_select %p148, %s147, 86
        %s150 = smul.u32 128, %s149
        %v151 = vld [vmem:[%s122] sm:$0xff]
        %v152 = vld [vmem:[%s122 + $0x8] sm:$0xff]
        %v153 = vld [vmem:[%s122 + $0x10] sm:$0xff]
        %v154 = vld [vmem:[%s122 + $0x18] sm:$0xff]
        %v155 = vld [vmem:[%s122 + $0x20] sm:$0xff]
        %v156 = vld [vmem:[%s122 + $0x28] sm:$0xff]
        %v157 = vld [vmem:[%s122 + $0x30] sm:$0xff]
        %v158 = vld [vmem:[%s122 + $0x38] sm:$0xff]
        %v159 = vld [vmem:[%s122 + $0x40] sm:$0xff]
        %v160 = vld [vmem:[%s122 + $0x48] sm:$0xff]
        %v161 = vld [vmem:[%s122 + $0x50] sm:$0xff]
        %v162 = vld [vmem:[%s122 + $0x58] sm:$0xff]
        %v163 = vld [vmem:[%s122 + $0x60] sm:$0xff]
        %v164 = vld [vmem:[%s122 + $0x68] sm:$0xff]
        %v165 = vld [vmem:[%s122 + $0x70] sm:$0xff]
        %v166 = vld [vmem:[%s122 + $0x78] sm:$0xff]
        %v167 = vld [vmem:[%s122 + $0x80] sm:$0xff]
        %v168 = vld [vmem:[%s122 + $0x88] sm:$0xff]
        %v169 = vld [vmem:[%s122 + $0x90] sm:$0xff]
        %v170 = vld [vmem:[%s122 + $0x98] sm:$0xff]
        %v171 = vld [vmem:[%s122 + $0xa0] sm:$0xff]
        %v172 = vld [vmem:[%s122 + $0xa8] sm:$0xff]
        %v173 = vld [vmem:[%s122 + $0xb0] sm:$0xff]
        %v174 = vld [vmem:[%s122 + $0xb8] sm:$0xff]
        %v175 = vld [vmem:[%s122 + $0xc0] sm:$0xff]
        %v176 = vld [vmem:[%s122 + $0xc8] sm:$0xff]
        %v177 = vld [vmem:[%s122 + $0xd0] sm:$0xff]
        %v178 = vld [vmem:[%s122 + $0xd8] sm:$0xff]
        %v179 = vld [vmem:[%s122 + $0xe0] sm:$0xff]
        %v180 = vld [vmem:[%s122 + $0xe8] sm:$0xff]
        %v181 = vld [vmem:[%s122 + $0xf0] sm:$0xff]
        %v182 = vld [vmem:[%s122 + $0xf8] sm:$0xff]
        %v183 = vld [vmem:[%s122 + $0x100] sm:$0xff]
        %v184 = vld [vmem:[%s122 + $0x108] sm:$0xff]
        %v185 = vld [vmem:[%s122 + $0x110] sm:$0xff]
        %v186 = vld [vmem:[%s122 + $0x118] sm:$0xff]
        %v187 = vld [vmem:[%s122 + $0x120] sm:$0xff]
        %v188 = vld [vmem:[%s122 + $0x128] sm:$0xff]
        %v189 = vld [vmem:[%s122 + $0x130] sm:$0xff]
        %v190 = vld [vmem:[%s122 + $0x138] sm:$0xff]
        %v191 = vld [vmem:[%s122 + $0x140] sm:$0xff]
        %v192 = vld [vmem:[%s122 + $0x148] sm:$0xff]
        %v193 = vld [vmem:[%s122 + $0x150] sm:$0xff]
        %v194 = vld [vmem:[%s122 + $0x158] sm:$0xff]
        %v195 = vld [vmem:[%s122 + $0x160] sm:$0xff]
        %v196 = vld [vmem:[%s122 + $0x168] sm:$0xff]
        %v197 = vld [vmem:[%s122 + $0x170] sm:$0xff]
        %v198 = vld [vmem:[%s122 + $0x178] sm:$0xff]
        %v199 = vld [vmem:[%s122 + $0x180] sm:$0xff]
        %v200 = vld [vmem:[%s122 + $0x188] sm:$0xff]
        %v201 = vld [vmem:[%s122 + $0x190] sm:$0xff]
        %v202 = vld [vmem:[%s122 + $0x198] sm:$0xff]
        %v203 = vld [vmem:[%s122 + $0x1a0] sm:$0xff]
        %v204 = vld [vmem:[%s122 + $0x1a8] sm:$0xff]
        %v205 = vld [vmem:[%s122 + $0x1b0] sm:$0xff]
        %v206 = vld [vmem:[%s122 + $0x1b8] sm:$0xff]
        %v207 = vld [vmem:[%s122 + $0x1c0] sm:$0xff]
        %v208 = vld [vmem:[%s122 + $0x1c8] sm:$0xff]
        %v209 = vld [vmem:[%s122 + $0x1d0] sm:$0xff]
        %v210 = vld [vmem:[%s122 + $0x1d8] sm:$0xff]
        %v211 = vld [vmem:[%s122 + $0x1e0] sm:$0xff]
        %v212 = vld [vmem:[%s122 + $0x1e8] sm:$0xff]
        %v213 = vld [vmem:[%s122 + $0x1f0] sm:$0xff]
        %v214 = vld [vmem:[%s122 + $0x1f8] sm:$0xff]
        %v215 = vld [vmem:[%s122 + $0x200] sm:$0xff]
        %v216 = vld [vmem:[%s122 + $0x208] sm:$0xff]
        %v217 = vld [vmem:[%s122 + $0x210] sm:$0xff]
        %v218 = vld [vmem:[%s122 + $0x218] sm:$0xff]
        %v219 = vld [vmem:[%s122 + $0x220] sm:$0xff]
        %v220 = vld [vmem:[%s122 + $0x228] sm:$0xff]
        %v221 = vld [vmem:[%s122 + $0x230] sm:$0xff]
        %v222 = vld [vmem:[%s122 + $0x238] sm:$0xff]
        %v223 = vld [vmem:[%s122 + $0x240] sm:$0xff]
        %v224 = vld [vmem:[%s122 + $0x248] sm:$0xff]
        %v225 = vld [vmem:[%s122 + $0x250] sm:$0xff]
        %v226 = vld [vmem:[%s122 + $0x258] sm:$0xff]
        %v227 = vld [vmem:[%s122 + $0x260] sm:$0xff]
        %v228 = vld [vmem:[%s122 + $0x268] sm:$0xff]
        %v229 = vld [vmem:[%s122 + $0x270] sm:$0xff]
        %v230 = vld [vmem:[%s122 + $0x278] sm:$0xff]
        %v231 = vld [vmem:[%s122 + $0x280] sm:$0xff]
        %v232 = vld [vmem:[%s122 + $0x288] sm:$0xff]
        %v233 = vld [vmem:[%s122 + $0x290] sm:$0xff]
        %v234 = vld [vmem:[%s122 + $0x298] sm:$0xff]
        %v235 = vld [vmem:[%s122 + $0x2a0] sm:$0xff]
        %v236 = vld [vmem:[%s122 + $0x2a8] sm:$0xff]
        %v237 = vmul.f32 %v151, %v151
        %v238 = vmul.f32 %v152, %v152
        %v239 = vmul.f32 %v153, %v153
        %v240 = vmul.f32 %v154, %v154
        %v241 = vmul.f32 %v155, %v155
        %v242 = vmul.f32 %v156, %v156
        %v243 = vmul.f32 %v157, %v157
        %v244 = vmul.f32 %v158, %v158
        %v245 = vmul.f32 %v159, %v159
        %v246 = vmul.f32 %v160, %v160
        %v247 = vmul.f32 %v161, %v161
        %v248 = vmul.f32 %v162, %v162
        %v249 = vmul.f32 %v163, %v163
        %v250 = vmul.f32 %v164, %v164
        %v251 = vmul.f32 %v165, %v165
        %v252 = vmul.f32 %v166, %v166
        %v253 = vmul.f32 %v167, %v167
        %v254 = vmul.f32 %v168, %v168
        %v255 = vmul.f32 %v169, %v169
        %v256 = vmul.f32 %v170, %v170
        %v257 = vmul.f32 %v171, %v171
        %v258 = vmul.f32 %v172, %v172
        %v259 = vmul.f32 %v173, %v173
        %v260 = vmul.f32 %v174, %v174
        %v261 = vmul.f32 %v175, %v175
        %v262 = vmul.f32 %v176, %v176
        %v263 = vmul.f32 %v177, %v177
        %v264 = vmul.f32 %v178, %v178
        %v265 = vmul.f32 %v179, %v179
        %v266 = vmul.f32 %v180, %v180
        %v267 = vmul.f32 %v181, %v181
        %v268 = vmul.f32 %v182, %v182
        %v269 = vmul.f32 %v183, %v183
        %v270 = vmul.f32 %v184, %v184
        %v271 = vmul.f32 %v185, %v185
        %v272 = vmul.f32 %v186, %v186
        %v273 = vmul.f32 %v187, %v187
        %v274 = vmul.f32 %v188, %v188
        %v275 = vmul.f32 %v189, %v189
        %v276 = vmul.f32 %v190, %v190
        %v277 = vmul.f32 %v191, %v191
        %v278 = vmul.f32 %v192, %v192
        %v279 = vmul.f32 %v193, %v193
        %v280 = vmul.f32 %v194, %v194
        %v281 = vmul.f32 %v195, %v195
        %v282 = vmul.f32 %v196, %v196
        %v283 = vmul.f32 %v197, %v197
        %v284 = vmul.f32 %v198, %v198
        %v285 = vmul.f32 %v199, %v199
        %v286 = vmul.f32 %v200, %v200
        %v287 = vmul.f32 %v201, %v201
        %v288 = vmul.f32 %v202, %v202
        %v289 = vmul.f32 %v203, %v203
        %v290 = vmul.f32 %v204, %v204
        %v291 = vmul.f32 %v205, %v205
        %v292 = vmul.f32 %v206, %v206
        %v293 = vmul.f32 %v207, %v207
        %v294 = vmul.f32 %v208, %v208
        %v295 = vmul.f32 %v209, %v209
        %v296 = vmul.f32 %v210, %v210
        %v297 = vmul.f32 %v211, %v211
        %v298 = vmul.f32 %v212, %v212
        %v299 = vmul.f32 %v213, %v213
        %v300 = vmul.f32 %v214, %v214
        %v301 = vmul.f32 %v215, %v215
        %v302 = vmul.f32 %v216, %v216
        %v303 = vmul.f32 %v217, %v217
        %v304 = vmul.f32 %v218, %v218
        %v305 = vmul.f32 %v219, %v219
        %v306 = vmul.f32 %v220, %v220
        %v307 = vmul.f32 %v221, %v221
        %v308 = vmul.f32 %v222, %v222
        %v309 = vmul.f32 %v223, %v223
        %v310 = vmul.f32 %v224, %v224
        %v311 = vmul.f32 %v225, %v225
        %v312 = vmul.f32 %v226, %v226
        %v313 = vmul.f32 %v227, %v227
        %v314 = vmul.f32 %v228, %v228
        %v315 = vmul.f32 %v229, %v229
        %v316 = vmul.f32 %v230, %v230
        %v317 = vmul.f32 %v231, %v231
        %v318 = vmul.f32 %v232, %v232
        %v319 = vmul.f32 %v233, %v233
        %v320 = vmul.f32 %v234, %v234
        %v321 = vmul.f32 %v235, %v235
        %v322 = vmul.f32 %v236, %v236
        %323 = vst [vmem:[%s140] sm:$0xff] %v237
        %324 = vst [vmem:[%s140 + $0x8] sm:$0xff] %v238
        %325 = vst [vmem:[%s140 + $0x10] sm:$0xff] %v239
        %326 = vst [vmem:[%s140 + $0x18] sm:$0xff] %v240
        %327 = vst [vmem:[%s140 + $0x20] sm:$0xff] %v241
        %328 = vst [vmem:[%s140 + $0x28] sm:$0xff] %v242
        %329 = vst [vmem:[%s140 + $0x30] sm:$0xff] %v243
        %330 = vst [vmem:[%s140 + $0x38] sm:$0xff] %v244
        %331 = vst [vmem:[%s140 + $0x40] sm:$0xff] %v245
        %332 = vst [vmem:[%s140 + $0x48] sm:$0xff] %v246
        %333 = vst [vmem:[%s140 + $0x50] sm:$0xff] %v247
        %334 = vst [vmem:[%s140 + $0x58] sm:$0xff] %v248
        %335 = vst [vmem:[%s140 + $0x60] sm:$0xff] %v249
        %336 = vst [vmem:[%s140 + $0x68] sm:$0xff] %v250
        %337 = vst [vmem:[%s140 + $0x70] sm:$0xff] %v251
        %338 = vst [vmem:[%s140 + $0x78] sm:$0xff] %v252
        %339 = vst [vmem:[%s140 + $0x80] sm:$0xff] %v253
        %340 = vst [vmem:[%s140 + $0x88] sm:$0xff] %v254
        %341 = vst [vmem:[%s140 + $0x90] sm:$0xff] %v255
        %342 = vst [vmem:[%s140 + $0x98] sm:$0xff] %v256
        %343 = vst [vmem:[%s140 + $0xa0] sm:$0xff] %v257
        %344 = vst [vmem:[%s140 + $0xa8] sm:$0xff] %v258
        %345 = vst [vmem:[%s140 + $0xb0] sm:$0xff] %v259
        %346 = vst [vmem:[%s140 + $0xb8] sm:$0xff] %v260
        %347 = vst [vmem:[%s140 + $0xc0] sm:$0xff] %v261
        %348 = vst [vmem:[%s140 + $0xc8] sm:$0xff] %v262
        %349 = vst [vmem:[%s140 + $0xd0] sm:$0xff] %v263
        %350 = vst [vmem:[%s140 + $0xd8] sm:$0xff] %v264
        %351 = vst [vmem:[%s140 + $0xe0] sm:$0xff] %v265
        %352 = vst [vmem:[%s140 + $0xe8] sm:$0xff] %v266
        %353 = vst [vmem:[%s140 + $0xf0] sm:$0xff] %v267
        %354 = vst [vmem:[%s140 + $0xf8] sm:$0xff] %v268
        %355 = vst [vmem:[%s140 + $0x100] sm:$0xff] %v269
        %356 = vst [vmem:[%s140 + $0x108] sm:$0xff] %v270
        %357 = vst [vmem:[%s140 + $0x110] sm:$0xff] %v271
        %358 = vst [vmem:[%s140 + $0x118] sm:$0xff] %v272
        %359 = vst [vmem:[%s140 + $0x120] sm:$0xff] %v273
        %360 = vst [vmem:[%s140 + $0x128] sm:$0xff] %v274
        %361 = vst [vmem:[%s140 + $0x130] sm:$0xff] %v275
        %362 = vst [vmem:[%s140 + $0x138] sm:$0xff] %v276
        %363 = vst [vmem:[%s140 + $0x140] sm:$0xff] %v277
        %364 = vst [vmem:[%s140 + $0x148] sm:$0xff] %v278
        %365 = vst [vmem:[%s140 + $0x150] sm:$0xff] %v279
        %366 = vst [vmem:[%s140 + $0x158] sm:$0xff] %v280
        %367 = vst [vmem:[%s140 + $0x160] sm:$0xff] %v281
        %368 = vst [vmem:[%s140 + $0x168] sm:$0xff] %v282
        %369 = vst [vmem:[%s140 + $0x170] sm:$0xff] %v283
        %370 = vst [vmem:[%s140 + $0x178] sm:$0xff] %v284
        %371 = vst [vmem:[%s140 + $0x180] sm:$0xff] %v285
        %372 = vst [vmem:[%s140 + $0x188] sm:$0xff] %v286
        %373 = vst [vmem:[%s140 + $0x190] sm:$0xff] %v287
        %374 = vst [vmem:[%s140 + $0x198] sm:$0xff] %v288
        %375 = vst [vmem:[%s140 + $0x1a0] sm:$0xff] %v289
        %376 = vst [vmem:[%s140 + $0x1a8] sm:$0xff] %v290
        %377 = vst [vmem:[%s140 + $0x1b0] sm:$0xff] %v291
        %378 = vst [vmem:[%s140 + $0x1b8] sm:$0xff] %v292
        %379 = vst [vmem:[%s140 + $0x1c0] sm:$0xff] %v293
        %380 = vst [vmem:[%s140 + $0x1c8] sm:$0xff] %v294
        %381 = vst [vmem:[%s140 + $0x1d0] sm:$0xff] %v295
        %382 = vst [vmem:[%s140 + $0x1d8] sm:$0xff] %v296
        %383 = vst [vmem:[%s140 + $0x1e0] sm:$0xff] %v297
        %384 = vst [vmem:[%s140 + $0x1e8] sm:$0xff] %v298
        %385 = vst [vmem:[%s140 + $0x1f0] sm:$0xff] %v299
        %386 = vst [vmem:[%s140 + $0x1f8] sm:$0xff] %v300
        %387 = vst [vmem:[%s140 + $0x200] sm:$0xff] %v301
        %388 = vst [vmem:[%s140 + $0x208] sm:$0xff] %v302
        %389 = vst [vmem:[%s140 + $0x210] sm:$0xff] %v303
        %390 = vst [vmem:[%s140 + $0x218] sm:$0xff] %v304
        %391 = vst [vmem:[%s140 + $0x220] sm:$0xff] %v305
        %392 = vst [vmem:[%s140 + $0x228] sm:$0xff] %v306
        %393 = vst [vmem:[%s140 + $0x230] sm:$0xff] %v307
        %394 = vst [vmem:[%s140 + $0x238] sm:$0xff] %v308
        %395 = vst [vmem:[%s140 + $0x240] sm:$0xff] %v309
        %396 = vst [vmem:[%s140 + $0x248] sm:$0xff] %v310
        %397 = vst [vmem:[%s140 + $0x250] sm:$0xff] %v311
        %398 = vst [vmem:[%s140 + $0x258] sm:$0xff] %v312
        %399 = vst [vmem:[%s140 + $0x260] sm:$0xff] %v313
        %400 = vst [vmem:[%s140 + $0x268] sm:$0xff] %v314
        %401 = vst [vmem:[%s140 + $0x270] sm:$0xff] %v315
        %402 = vst [vmem:[%s140 + $0x278] sm:$0xff] %v316
        %403 = vst [vmem:[%s140 + $0x280] sm:$0xff] %v317
        %404 = vst [vmem:[%s140 + $0x288] sm:$0xff] %v318
        %405 = vst [vmem:[%s140 + $0x290] sm:$0xff] %v319
        %406 = vst [vmem:[%s140 + $0x298] sm:$0xff] %v320
        %407 = vst [vmem:[%s140 + $0x2a0] sm:$0xff] %v321
        %408 = vst [vmem:[%s140 + $0x2a8] sm:$0xff] %v322
        %s409 = sand.u32 %s52, 1
        %s410 = scalar_lea.sflag [#allocation4], %s409
        %s411 = sand.u32 %s52, 1
        %s412 = smul.addr %s411, 688
        %s413 = scalar_lea.vmem [#allocation5], %s412
        // Predicated region
        $region29: #{tpu_custom_call.1} parent=23 // pred_check
          %p414 = pneg %p62
        $region30: #{tpu_custom_call.1} parent=23 // pred_check_branch
          %416 = sbr.rel (%p414) target = $region32
        $region31: #{tpu_custom_call.1} parent=23 // pred_region
          %s417 = smul.u32 86, %s18
          %s418 = ssub.s32 256, %s417
          %p419 = scmp.lt.s32.totalorder %s418, 86
          %s420 = scalar_select %p419, %s418, 86
          %s421 = smul.u32 128, %s420
          %s423 = ssub.s32 11008, %s421
          %424 = vsyncadd %s410, %s423
          %p425 = scmp.ne.s32.totalorder 0, %s421
          %s426 = smul.addr %s417, 128
          %s427 = scalar_lea.hbm %s1, %s426
          %s428 = smul.u32 8, %s420
          %s429 = sshll.u32 %s413, 4
          %s430 = int_to_ptr.vmem [resolvable:$true] %s429
          %s431 = sshll.u32 %s428, 4
          %435 = dma.vmem_to_hbm [thread:$0]  (%p425), %s430, %s431, %s427, %s410, 128, 128, 8
        $region32: #{tpu_custom_call.1} parent=23 // pred_fallthru
          _
      $region24: #{tpu_custom_call.1} parent=5 // pred_fallthru
        _
      %p436 = scmp.le.s32.totalorder 2, %s13
      // Predicated region
      $region33: #{tpu_custom_call.1} parent=5 // pred_check
        %p437 = pneg %p436
      $region34: #{tpu_custom_call.1} parent=5 // pred_check_branch
        %439 = sbr.rel (%p437) target = $region36
      $region35: #{tpu_custom_call.1} parent=5 // pred_region
        %s440 = ssub.s32 %s13, 2
        // Predicated region
        $region37: #{tpu_custom_call.1} parent=35 // pred_check
          %p441 = pneg %p68
        $region38: #{tpu_custom_call.1} parent=35 // pred_check_branch
          %443 = sbr.rel (%p441) target = $region40
        $region39: #{tpu_custom_call.1} parent=35 // pred_region
          %s444 = sand.u32 %s53, 1
          %s445 = scalar_lea.sflag [#allocation4], %s444
          %s446 = sand.u32 %s53, 1
          %s447 = smul.addr %s446, 688
          %s448 = scalar_lea.vmem [#allocation5], %s447
          %449 = dma.done %s445, 11008
        $region40: #{tpu_custom_call.1} parent=35 // pred_fallthru
          _
      $region36: #{tpu_custom_call.1} parent=5 // pred_fallthru
        _
    $region6: #{tpu_custom_call.1} parent=1 // loop_footer
      %s17 = sadd.s32 1, %s13
    $region7: #{tpu_custom_call.1} parent=1 // loop_footer_branch
      %12 = sbr.rel target = $region3
    $region8: #{tpu_custom_call.1} parent=1 // loop_exit
      _
    %450 = vsyncpa [#allocation3], 1
    %s451 = scalar_lea.sflag [#allocation3], 1
    %452 = vsyncpa %s451, 1
    %453 = vsyncpa [#allocation4], 1
    %s454 = scalar_lea.sflag [#allocation4], 1
    %455 = vsyncpa %s454, 1

</llo_original>
